<compile_context>
chip_gen: v5e
topology: v5e:2x2
jax: 0.10.0
libtpu: 0.0.40
codegen_flags: <defaults>
</compile_context>

<pallas_src>
import functools

import jax
import jax.numpy as jnp
import numpy as np
from jax.experimental import pallas as pl
from jax.experimental.pallas import tpu as pltpu


def joint_attention_kernel(x_ref, wkj_ref, wv_ref, bkj_ref, bv_ref, o_ref,
                           m_ref, l_ref, acc_ref, *, approx_reciprocal):
    # x_ref   : (Nc, D)   one N-chunk of one batch element (compute dtype)
    # wkj_ref : (D, J)    folded k-projection @ joint_emb.T (compute dtype)
    # wv_ref  : (D, Dp)   v-projection weight, feature dim padded (compute dtype)
    # bkj_ref : (1, J)    folded k bias (f32)
    # bv_ref  : (1, Dp)   v bias, padded (f32)
    # o_ref   : (J, Dp)   per-batch output block
    # m_ref   : (1, J)    running max over N (f32 scratch)
    # l_ref   : (1, J)    running softmax denominator (f32 scratch)
    # acc_ref : (Dp, J)   running numerator, transposed layout (f32 scratch)
    n = pl.program_id(1)

    @pl.when(n == 0)
    def _():
        m_ref[...] = jnp.full_like(m_ref, -jnp.inf)
        l_ref[...] = jnp.zeros_like(l_ref)
        acc_ref[...] = jnp.zeros_like(acc_ref)

    x = x_ref[...]                                   # (Nc, D), compute dtype
    cdt = x.dtype

    # logits = x @ (w_k @ joint_emb.T) + b_k @ joint_emb.T   -> (Nc, J), f32
    logits = jnp.dot(x, wkj_ref[...], preferred_element_type=jnp.float32) + bkj_ref[...]
    # v      = x @ w_v + b_v                                  -> (Nc, Dp), f32
    v = jnp.dot(x, wv_ref[...], preferred_element_type=jnp.float32) + bv_ref[...]

    # Online softmax over the sequence (N) axis, stats in f32.
    m_prev = m_ref[...]                              # (1, J)
    m_new = jnp.maximum(m_prev, jnp.max(logits, axis=0, keepdims=True))
    alpha = jnp.exp(m_prev - m_new)                  # (1, J); exp(-inf)=0 on first chunk
    p = jnp.exp(logits - m_new)                      # (Nc, J)
    l_ref[...] = alpha * l_ref[...] + jnp.sum(p, axis=0, keepdims=True)
    m_ref[...] = m_new

    # Numerator accumulated transposed: acc_t[d, j] += sum_n v[n, d] * p[n, j]
    # so the alpha / 1/l scales are plain sublane broadcasts of (1, J) rows.
    pv_t = jax.lax.dot_general(
        v.astype(cdt), p.astype(cdt),
        dimension_numbers=(((0,), (0,)), ((), ())),
        preferred_element_type=jnp.float32)          # (Dp, J)
    acc_ref[...] = acc_ref[...] * alpha + pv_t

    @pl.when(n == pl.num_programs(1) - 1)
    def _():
        inv_l = pl.reciprocal(l_ref[...], approx=approx_reciprocal)      # (1, J)
        o_ref[...] = jnp.transpose(acc_ref[...] * inv_l).astype(o_ref.dtype)  # (J, Dp)


def joint_attention(x, w_kv, b_kv, joint_emb, *, compute_dtype=None, n_block=None,
                    approx_reciprocal=None):
    """x: (B, N, D); w_kv: (D, 2D) (pre-transposed Linear weight); b_kv: (2D,);
    joint_emb: (J, D) or (1, J, D).  Returns (B, J, D)."""
    B, N, D = x.shape
    out_dtype = x.dtype
    if joint_emb.ndim == 3:
        joint_emb = joint_emb[0]
    J = joint_emb.shape[0]

    compute_dtype = np.dtype(compute_dtype) if compute_dtype is not None else np.dtype(x.dtype)
    if approx_reciprocal is None:
        approx_reciprocal = compute_dtype != np.dtype(np.float32)

    # Sequence-chunk size: whole N for small sequences, otherwise a large divisor.
    if n_block is None:
        n_block = N
        if N > 512:
            for cand in (512, 256, 128):
                if N % cand == 0:
                    n_block = cand
                    break
    assert N % n_block == 0, "n_block must divide N"
    assert n_block == N or n_block % 8 == 0, "n_block must be N or a multiple of 8"
    num_n = N // n_block

    # Host-side weight prep (done once; constants).
    w_k = w_kv[:, :D]
    w_v = w_kv[:, D:]
    b_k = b_kv[:D]
    b_v = b_kv[D:]

    # Fold the k projection into the joint embedding (exact algebra, f32-accurate).
    w_kj = jnp.dot(w_k, joint_emb.T, precision="highest").astype(compute_dtype)      # (D, J)
    b_kj = jnp.dot(b_k, joint_emb.T, precision="highest").reshape(1, J).astype(jnp.float32)

    # Lane-dense output: pad the v / output feature dim to a multiple of 128.
    Dp = ((D + 127) // 128) * 128
    w_v_c = w_v.astype(compute_dtype)
    if Dp != D:
        w_v_c = jnp.pad(w_v_c, ((0, 0), (0, Dp - D)))
        b_v = jnp.pad(b_v, (0, Dp - D))
    b_v = b_v.reshape(1, Dp).astype(jnp.float32)

    x_c = x.astype(compute_dtype)

    kernel = functools.partial(joint_attention_kernel,
                               approx_reciprocal=bool(approx_reciprocal))

    # VMEM budget from the chosen blocks (double buffers + scratch + f32 temps).
    cdt_size = int(compute_dtype.itemsize)
    out_size = int(np.dtype(out_dtype).itemsize)
    est_bytes = (
        2 * n_block * D * cdt_size                 # x block
        + 2 * (D * J + D * Dp) * cdt_size          # weights
        + 2 * (J + Dp) * 4                         # biases
        + 2 * J * Dp * out_size                    # out block
        + (Dp * J + 2 * J) * 4                     # scratch accumulators
        + (n_block * (2 * J + Dp) + Dp * J) * 4    # f32 intermediates
    )
    vmem_limit = int(min(64 * 2**20, max(32 * 2**20, 2 * est_bytes)))

    flops = 2 * B * N * D * (J + Dp) + 2 * B * N * J * Dp
    bytes_accessed = (
        x_c.size * cdt_size + w_kj.size * cdt_size + w_v_c.size * cdt_size
        + (J + Dp) * 4 + B * J * Dp * out_size
    )

    out_padded = pl.pallas_call(
        kernel,
        out_shape=jax.ShapeDtypeStruct((B, J, Dp), out_dtype),
        grid_spec=pltpu.PrefetchScalarGridSpec(
            num_scalar_prefetch=0,
            grid=(B, num_n),
            in_specs=[
                pl.BlockSpec((None, n_block, D), lambda b, n: (b, n, 0)),  # x
                pl.BlockSpec((D, J), lambda b, n: (0, 0)),                 # W_kj (folded)
                pl.BlockSpec((D, Dp), lambda b, n: (0, 0)),                # W_v (padded)
                pl.BlockSpec((1, J), lambda b, n: (0, 0)),                 # b_kj (folded)
                pl.BlockSpec((1, Dp), lambda b, n: (0, 0)),                # b_v (padded)
            ],
            out_specs=pl.BlockSpec((None, J, Dp), lambda b, n: (b, 0, 0)),
            scratch_shapes=[
                pltpu.VMEM((1, J), jnp.float32),    # running max
                pltpu.VMEM((1, J), jnp.float32),    # running denominator
                pltpu.VMEM((Dp, J), jnp.float32),   # running numerator (transposed)
            ],
        ),
        compiler_params=pltpu.CompilerParams(
            dimension_semantics=("parallel", "arbitrary"),
            vmem_limit_bytes=vmem_limit,
        ),
        cost_estimate=pl.CostEstimate(
            flops=int(flops),
            transcendentals=int(B * N * J + B * num_n * J),
            bytes_accessed=int(bytes_accessed),
        ),
    )(x_c, w_kj, w_v_c, b_kj, b_v)

    return out_padded[..., :D]


def joint_attention_ref(x, w_kv, b_kv, joint_emb):
    """Pure-JAX reference matching the PyTorch module (full f32 matmul precision)."""
    kv = jnp.einsum("bnd,de->bne", x, w_kv, precision="highest") + b_kv   # (B, N, 2D)
    D = x.shape[-1]
    k, v = kv[..., :D], kv[..., D:]
    attn = jnp.einsum("bnd,jd->bnj", k, joint_emb, precision="highest")   # (B, N, J)
    attn = jax.nn.softmax(attn, axis=1)                                   # over N
    return jnp.einsum("bnj,bnd->bjd", attn, v, precision="highest")       # (B, J, D)


if __name__ == "__main__":
    B, N, D, J = 2, 16, 32, 13   # num_joints=13, dim=32 (small synthetic config)

    key = jax.random.PRNGKey(0)
    kx, kje, kw, kb = jax.random.split(key, 4)

    x = jax.random.normal(kx, (B, N, D), dtype=jnp.float32)
    joint_emb = jax.random.normal(kje, (J, D), dtype=jnp.float32)   # nn.Parameter(randn(1,J,D))
    # nn.Linear(dim, 2*dim): weight (2D, D), bias (2D,). Pre-transposed to (D, 2D).
    w_kv = jax.random.normal(kw, (D, 2 * D), dtype=jnp.float32) * (1.0 / np.sqrt(D))
    b_kv = jax.random.normal(kb, (2 * D,), dtype=jnp.float32) * 0.01

    ref = joint_attention_ref(x, w_kv, b_kv, joint_emb)

    # f32 compute path (loosened tolerance: the host-side w_k fold changes rounding).
    out_f32 = jax.block_until_ready(joint_attention(x, w_kv, b_kv, joint_emb))
    np.testing.assert_allclose(np.asarray(out_f32), np.asarray(ref), rtol=1e-3, atol=1e-3)

    # bf16 matmul inputs / f32 accumulation path (valid on v5e / v6e / v7x).
    out_bf16 = jax.block_until_ready(
        joint_attention(x, w_kv, b_kv, joint_emb, compute_dtype=jnp.bfloat16))
    np.testing.assert_allclose(np.asarray(out_bf16), np.asarray(ref), rtol=2e-1, atol=2e-1)

    print("KERNEL_OK")
</pallas_src>

<mosaic_0001>
module attributes {stable_mosaic.version = 11 : i64} {
  func.func @joint_attention_kernel(%arg0: i32, %arg1: i32, %arg2: memref<1x16x32xf32, #tpu.memory_space<vmem>>, %arg3: memref<32x13xf32, #tpu.memory_space<vmem>>, %arg4: memref<32x128xf32, #tpu.memory_space<vmem>>, %arg5: memref<1x13xf32, #tpu.memory_space<vmem>>, %arg6: memref<1x128xf32, #tpu.memory_space<vmem>>, %arg7: memref<1x13x128xf32, #tpu.memory_space<vmem>>, %arg8: memref<1x13xf32, #tpu.memory_space<vmem>>, %arg9: memref<1x13xf32, #tpu.memory_space<vmem>>, %arg10: memref<128x13xf32, #tpu.memory_space<vmem>>) attributes {dimension_semantics = [#tpu.dimension_semantics<parallel>, #tpu.dimension_semantics<arbitrary>], iteration_bounds = array<i64: 2, 1>, scalar_prefetch = 0 : i64, scratch_operands = 3 : i64, tpu.core_type = #tpu.core_type<tc>, window_params = [{transform_indices = @transform_0, window_bounds = array<i64: 1, 16, 32>}, {pipeline_mode = #tpu.pipeline_mode<synchronous>, transform_indices = @transform_1, window_bounds = array<i64: 32, 13>}, {pipeline_mode = #tpu.pipeline_mode<synchronous>, transform_indices = @transform_2, window_bounds = array<i64: 32, 128>}, {pipeline_mode = #tpu.pipeline_mode<synchronous>, transform_indices = @transform_3, window_bounds = array<i64: 1, 13>}, {pipeline_mode = #tpu.pipeline_mode<synchronous>, transform_indices = @transform_4, window_bounds = array<i64: 1, 128>}, {transform_indices = @transform_5, window_bounds = array<i64: 1, 13, 128>}]} {
    %c0_i32 = arith.constant 0 : i32
    %0 = arith.cmpi eq, %arg1, %c0_i32 : i32
    %1 = arith.extui %0 : i1 to i32
    %c0_i32_0 = arith.constant 0 : i32
    %2 = arith.cmpi ne, %1, %c0_i32_0 : i32
    scf.if %2 {
      %cst_29 = arith.constant 0xFF800000 : f32
      %40 = vector.broadcast %cst_29 : f32 to vector<1x13xf32>
      %c0_30 = arith.constant 0 : index
      %c0_31 = arith.constant 0 : index
      %41 = vector.load %arg8[%c0_30, %c0_31] : memref<1x13xf32, #tpu.memory_space<vmem>>, vector<1x13xf32>
      tpu.vector_store %arg8[%c0_30, %c0_31], %40 {strides = array<i32>} : memref<1x13xf32, #tpu.memory_space<vmem>>, vector<1x13xf32>,
      %cst_32 = arith.constant 0.000000e+00 : f32
      %42 = vector.broadcast %cst_32 : f32 to vector<1x13xf32>
      %c0_33 = arith.constant 0 : index
      %c0_34 = arith.constant 0 : index
      %43 = vector.load %arg9[%c0_33, %c0_34] : memref<1x13xf32, #tpu.memory_space<vmem>>, vector<1x13xf32>
      tpu.vector_store %arg9[%c0_33, %c0_34], %42 {strides = array<i32>} : memref<1x13xf32, #tpu.memory_space<vmem>>, vector<1x13xf32>,
      %cst_35 = arith.constant 0.000000e+00 : f32
      %44 = vector.broadcast %cst_35 : f32 to vector<128x13xf32>
      %c0_36 = arith.constant 0 : index
      %c0_37 = arith.constant 0 : index
      %45 = vector.load %arg10[%c0_36, %c0_37] : memref<128x13xf32, #tpu.memory_space<vmem>>, vector<128x13xf32>
      tpu.vector_store %arg10[%c0_36, %c0_37], %44 {strides = array<i32>} : memref<128x13xf32, #tpu.memory_space<vmem>>, vector<128x13xf32>,
    } else {
    }
    %c0 = arith.constant 0 : index
    %c0_1 = arith.constant 0 : index
    %c0_2 = arith.constant 0 : index
    %3 = vector.load %arg2[%c0, %c0_1, %c0_2] : memref<1x16x32xf32, #tpu.memory_space<vmem>>, vector<1x16x32xf32>
    %4 = vector.shape_cast %3 : vector<1x16x32xf32> to vector<16x32xf32>
    %c0_3 = arith.constant 0 : index
    %c0_4 = arith.constant 0 : index
    %5 = vector.load %arg3[%c0_3, %c0_4] : memref<32x13xf32, #tpu.memory_space<vmem>>, vector<32x13xf32>
    %cst = arith.constant dense<0.000000e+00> : vector<16x13xf32>
    %6 = tpu.matmul %4, %5, %cst {dimension_numbers = #tpu.dot_dimension_numbers<[1], [0], [0], [1], [0, 0, 1, 1], [], []>} : vector<16x32xf32>, vector<32x13xf32>, vector<16x13xf32> -> vector<16x13xf32>
    %c0_5 = arith.constant 0 : index
    %c0_6 = arith.constant 0 : index
    %7 = vector.load %arg5[%c0_5, %c0_6] : memref<1x13xf32, #tpu.memory_space<vmem>>, vector<1x13xf32>
    %8 = vector.broadcast %7 : vector<1x13xf32> to vector<16x13xf32>
    %9 = arith.addf %6, %8 : vector<16x13xf32>
    %c0_7 = arith.constant 0 : index
    %c0_8 = arith.constant 0 : index
    %10 = vector.load %arg4[%c0_7, %c0_8] : memref<32x128xf32, #tpu.memory_space<vmem>>, vector<32x128xf32>
    %cst_9 = arith.constant dense<0.000000e+00> : vector<16x128xf32>
    %11 = tpu.matmul %4, %10, %cst_9 {dimension_numbers = #tpu.dot_dimension_numbers<[1], [0], [0], [1], [0, 0, 1, 1], [], []>} : vector<16x32xf32>, vector<32x128xf32>, vector<16x128xf32> -> vector<16x128xf32>
    %c0_10 = arith.constant 0 : index
    %c0_11 = arith.constant 0 : index
    %12 = vector.load %arg6[%c0_10, %c0_11] : memref<1x128xf32, #tpu.memory_space<vmem>>, vector<1x128xf32>
    %13 = vector.broadcast %12 : vector<1x128xf32> to vector<16x128xf32>
    %14 = arith.addf %11, %13 : vector<16x128xf32>
    %c0_12 = arith.constant 0 : index
    %c0_13 = arith.constant 0 : index
    %15 = vector.load %arg8[%c0_12, %c0_13] : memref<1x13xf32, #tpu.memory_space<vmem>>, vector<1x13xf32>
    %cst_14 = arith.constant dense<0xFF800000> : vector<13xf32>
    %16 = vector.multi_reduction <maximumf>, %9, %cst_14 [0] : vector<16x13xf32> to vector<13xf32>
    %17 = vector.shape_cast %16 : vector<13xf32> to vector<1x13xf32>
    %18 = arith.maximumf %15, %17 : vector<1x13xf32>
    %19 = arith.subf %15, %18 : vector<1x13xf32>
    %20 = math.exp %19 : vector<1x13xf32>
    %21 = vector.broadcast %18 : vector<1x13xf32> to vector<16x13xf32>
    %22 = arith.subf %9, %21 : vector<16x13xf32>
    %23 = math.exp %22 : vector<16x13xf32>
    %c0_15 = arith.constant 0 : index
    %c0_16 = arith.constant 0 : index
    %24 = vector.load %arg9[%c0_15, %c0_16] : memref<1x13xf32, #tpu.memory_space<vmem>>, vector<1x13xf32>
    %25 = arith.mulf %20, %24 : vector<1x13xf32>
    %cst_17 = arith.constant dense<0.000000e+00> : vector<13xf32>
    %26 = vector.multi_reduction <add>, %23, %cst_17 [0] : vector<16x13xf32> to vector<13xf32>
    %27 = vector.shape_cast %26 : vector<13xf32> to vector<1x13xf32>
    %28 = arith.addf %25, %27 : vector<1x13xf32>
    %c0_18 = arith.constant 0 : index
    %c0_19 = arith.constant 0 : index
    %29 = vector.load %arg9[%c0_18, %c0_19] : memref<1x13xf32, #tpu.memory_space<vmem>>, vector<1x13xf32>
    tpu.vector_store %arg9[%c0_18, %c0_19], %28 {strides = array<i32>} : memref<1x13xf32, #tpu.memory_space<vmem>>, vector<1x13xf32>,
    %c0_20 = arith.constant 0 : index
    %c0_21 = arith.constant 0 : index
    %30 = vector.load %arg8[%c0_20, %c0_21] : memref<1x13xf32, #tpu.memory_space<vmem>>, vector<1x13xf32>
    tpu.vector_store %arg8[%c0_20, %c0_21], %18 {strides = array<i32>} : memref<1x13xf32, #tpu.memory_space<vmem>>, vector<1x13xf32>,
    %cst_22 = arith.constant dense<0.000000e+00> : vector<128x13xf32>
    %31 = tpu.matmul %14, %23, %cst_22 {dimension_numbers = #tpu.dot_dimension_numbers<[0], [0], [1], [1], [0, 1, 1, 1], [], []>} : vector<16x128xf32>, vector<16x13xf32>, vector<128x13xf32> -> vector<128x13xf32>
    %c0_23 = arith.constant 0 : index
    %c0_24 = arith.constant 0 : index
    %32 = vector.load %arg10[%c0_23, %c0_24] : memref<128x13xf32, #tpu.memory_space<vmem>>, vector<128x13xf32>
    %33 = vector.broadcast %20 : vector<1x13xf32> to vector<128x13xf32>
    %34 = arith.mulf %32, %33 : vector<128x13xf32>
    %35 = arith.addf %34, %31 : vector<128x13xf32>
    %c0_25 = arith.constant 0 : index
    %c0_26 = arith.constant 0 : index
    %36 = vector.load %arg10[%c0_25, %c0_26] : memref<128x13xf32, #tpu.memory_space<vmem>>, vector<128x13xf32>
    tpu.vector_store %arg10[%c0_25, %c0_26], %35 {strides = array<i32>} : memref<128x13xf32, #tpu.memory_space<vmem>>, vector<128x13xf32>,
    %c0_i32_27 = arith.constant 0 : i32
    %37 = arith.cmpi eq, %arg1, %c0_i32_27 : i32
    %38 = arith.extui %37 : i1 to i32
    %c0_i32_28 = arith.constant 0 : i32
    %39 = arith.cmpi ne, %38, %c0_i32_28 : i32
    scf.if %39 {
      %c0_29 = arith.constant 0 : index
      %c0_30 = arith.constant 0 : index
      %40 = vector.load %arg9[%c0_29, %c0_30] : memref<1x13xf32, #tpu.memory_space<vmem>>, vector<1x13xf32>
      %41 = tpu.reciprocal %40 : vector<1x13xf32> -> vector<1x13xf32>
      %c0_31 = arith.constant 0 : index
      %c0_32 = arith.constant 0 : index
      %42 = vector.load %arg10[%c0_31, %c0_32] : memref<128x13xf32, #tpu.memory_space<vmem>>, vector<128x13xf32>
      %43 = vector.broadcast %41 : vector<1x13xf32> to vector<128x13xf32>
      %44 = arith.mulf %42, %43 : vector<128x13xf32>
      %45 = tpu.transpose %44, [1, 0] : vector<128x13xf32> -> vector<13x128xf32>
      %c0_33 = arith.constant 0 : index
      %c0_34 = arith.constant 0 : index
      %c0_35 = arith.constant 0 : index
      %46 = vector.load %arg7[%c0_33, %c0_34, %c0_35] : memref<1x13x128xf32, #tpu.memory_space<vmem>>, vector<1x13x128xf32>
      %47 = vector.shape_cast %46 : vector<1x13x128xf32> to vector<13x128xf32>
      %48 = vector.shape_cast %45 : vector<13x128xf32> to vector<1x13x128xf32>
      tpu.vector_store %arg7[%c0_33, %c0_34, %c0_35], %48 {strides = array<i32>} : memref<1x13x128xf32, #tpu.memory_space<vmem>>, vector<1x13x128xf32>,
    } else {
    }
    return
  }
  func.func @transform_0(%arg0: i32, %arg1: i32) -> (i32, i32, i32) {
    %c0_i32 = arith.constant 0 : i32
    %c0_i32_0 = arith.constant 0 : i32
    return %arg0, %arg1, %c0_i32 : i32, i32, i32
  }
  func.func @transform_1(%arg0: i32, %arg1: i32) -> (i32, i32) {
    %c0_i32 = arith.constant 0 : i32
    %c0_i32_0 = arith.constant 0 : i32
    %c0_i32_1 = arith.constant 0 : i32
    return %c0_i32, %c0_i32_0 : i32, i32
  }
  func.func @transform_2(%arg0: i32, %arg1: i32) -> (i32, i32) {
    %c0_i32 = arith.constant 0 : i32
    %c0_i32_0 = arith.constant 0 : i32
    %c0_i32_1 = arith.constant 0 : i32
    return %c0_i32, %c0_i32_0 : i32, i32
  }
  func.func @transform_3(%arg0: i32, %arg1: i32) -> (i32, i32) {
    %c0_i32 = arith.constant 0 : i32
    %c0_i32_0 = arith.constant 0 : i32
    %c0_i32_1 = arith.constant 0 : i32
    return %c0_i32, %c0_i32_0 : i32, i32
  }
  func.func @transform_4(%arg0: i32, %arg1: i32) -> (i32, i32) {
    %c0_i32 = arith.constant 0 : i32
    %c0_i32_0 = arith.constant 0 : i32
    %c0_i32_1 = arith.constant 0 : i32
    return %c0_i32, %c0_i32_0 : i32, i32
  }
  func.func @transform_5(%arg0: i32, %arg1: i32) -> (i32, i32, i32) {
    %c0_i32 = arith.constant 0 : i32
    %c0_i32_0 = arith.constant 0 : i32
    %c0_i32_1 = arith.constant 0 : i32
    return %arg0, %c0_i32, %c0_i32_0 : i32, i32, i32
  }
}

</mosaic_0001>

<llo_original>
// kernel: tpu_custom_call.1
$region0: #{tpu_custom_call.1}
  #allocation0 [shape = 'u32[]', space=smem, size = 0x4, offset = 0x4, fixed_abs, tag = 'smem constant byte address 0x4 - core index']
  #allocation1 [shape = 'u32[72,128]{1,0:T(1,128)}', space=vmem, size = 0x9000, scoped, tag = 'internal scratch']
  #allocation2 [shape = 'f32[1,13]{1,0:T(1,128)}', space=vmem, size = 0x200, scoped, tag = 'scratch operand']
  #allocation3 [shape = 'f32[1,13]{1,0:T(1,128)}', space=vmem, size = 0x200, scoped, tag = 'scratch operand']
  #allocation4 [shape = 'f32[128,13]{1,0:T(8,128)}', space=vmem, size = 0x10000, scoped, tag = 'scratch operand']
  %s0 = inlined_call_operand.vmem [shape: f32[2,16,32], index: 0, kind: input, shape index: {}]
  %s1 = inlined_call_operand.vmem [shape: f32[32,13], index: 1, kind: input, shape index: {}]
  %s2 = inlined_call_operand.hbm [shape: f32[32,128], index: 2, kind: input, shape index: {}]
  %s3 = inlined_call_operand.vmem [shape: f32[1,13], index: 3, kind: input, shape index: {}]
  %s4 = inlined_call_operand.vmem [shape: f32[1,128], index: 4, kind: input, shape index: {}]
  %s5 = inlined_call_operand.vmem [shape: f32[2,13,128], index: 5, kind: output, shape index: {}]
  %s6 = sld [smem:[#allocation0]]
  $region65: #{tpu_custom_call.1} parent=0
    _
  %s8 = ssub.s32 1, %s6
  %s9 = scalar_select 0, %s8, %s6
  $region1: #{tpu_custom_call.1} parent=0
    #allocation5 [shape = 'u8[16384]{0}', space=vmem, size = 0x4000, scoped, tag = 'input window, operand 2, single buffered']
    #allocation6 [shape = 's32[2]{0}', space=sflag, size = 0x8, scoped, tag = 'scoped memory for tpu_custom_call.1']
    %10 = vsyncpa [#allocation6], 0
    loop: start=0, step=1, limit=4
    $region2: #{tpu_custom_call.1} parent=1 // loop_pre_header
      _
    $region3: #{tpu_custom_call.1} parent=1 // loop_header
      %s12 = sphi 0, %s16
      %p13 = scmp.ge.s32.totalorder %s12, 4
      %s19 = sphi 0, %s31
      %s20 = sphi 0, %s27
      %s21 = sphi 0, %s19
      %s22 = sphi 0, %s20
      %s23 = sphi 0, %s21
      %s24 = sphi 0, %s22
      %s36 = sphi 0, %s38
      %s39 = sphi 0, %s36
      %s40 = sphi 0, %s39
      %s56 = sphi 0, %s40
      %s60 = sphi 0, %s60
      %s62 = sphi 0, %s60
      %s63 = sphi 0, %s62
      %s77 = sphi 0, %s63
      %s81 = sphi 0, %s81
      %s83 = sphi 0, %s81
      %s84 = sphi 0, %s83
      %s98 = sphi 0, %s84
      %s102 = sphi 0, %s102
      %s104 = sphi 0, %s102
      %s105 = sphi 0, %s104
      %s119 = sphi 0, %s105
      %s123 = sphi 0, %s123
      %s125 = sphi 0, %s123
      %s126 = sphi 0, %s125
      %s140 = sphi 0, %s126
      %s146 = sphi 0, %s148
      %s149 = sphi 0, %s146
      %s150 = sphi 0, %s149
      %s166 = sphi 0, %s150
    $region4: #{tpu_custom_call.1} parent=1 // loop_header_branch
      %15 = sbr.rel (%p13) target = $region8
    $region5: #{tpu_custom_call.1} parent=1 // loop_body
      %s17 = ssub.s32 %s12, 1
      %s18 = ssub.s32 %s12, 2
      %s25 = sadd.s32 1, %s20
      %p26 = scmp.ge.s32.totalorder %s25, 1
      %s27 = scalar_select %p26, 0, %s25
      %s28 = sadd.s32 1, %s19
      %s29 = scalar_select %p26, %s28, %s19
      %p30 = scmp.ge.s32.totalorder %s29, 2
      %s31 = scalar_select %p30, 0, %s29
      %s32 = ssub.s32 %s19, %s31
      %s33 = ssub.s32 %s20, %s27
      %s34 = sor.u32 %s32, %s33
      %p35 = scmp.eq.s32.totalorder %s34, 0
      %s37 = sadd.s32 %s36, 1
      %s38 = scalar_select %p35, %s36, %s37
      %p41 = pneg %p35
      %p42 = scmp.eq.s32.totalorder %s12, 1
      %p43 = por %p41, %p42
      %p44 = scmp.ne.s32.totalorder %s36, %s39
      %p45 = scmp.eq.s32.totalorder %s12, 0
      %p46 = por %p44, %p45
      %p47 = scmp.ne.s32.totalorder %s36, %s39
      %p48 = scmp.eq.s32.totalorder %s17, 1
      %p49 = por %p47, %p48
      %p50 = scmp.ne.s32.totalorder %s39, %s40
      %p51 = scmp.eq.s32.totalorder %s17, 0
      %p52 = por %p50, %p51
      %p53 = scmp.ne.s32.totalorder %s39, %s40
      %p54 = scmp.eq.s32.totalorder %s18, 1
      %p55 = por %p53, %p54
      %p57 = scmp.ne.s32.totalorder %s40, %s56
      %p58 = scmp.eq.s32.totalorder %s18, 0
      %p59 = por %p57, %p58
      %s61 = sadd.s32 %s60, 1
      %p64 = scmp.eq.s32.totalorder %s12, 1
      %p65 = scmp.ne.s32.totalorder %s60, %s62
      %p66 = scmp.eq.s32.totalorder %s12, 0
      %p67 = por %p65, %p66
      %p68 = scmp.ne.s32.totalorder %s60, %s62
      %p69 = scmp.eq.s32.totalorder %s17, 1
      %p70 = por %p68, %p69
      %p71 = scmp.ne.s32.totalorder %s62, %s63
      %p72 = scmp.eq.s32.totalorder %s17, 0
      %p73 = por %p71, %p72
      %p74 = scmp.ne.s32.totalorder %s62, %s63
      %p75 = scmp.eq.s32.totalorder %s18, 1
      %p76 = por %p74, %p75
      %p78 = scmp.ne.s32.totalorder %s63, %s77
      %p79 = scmp.eq.s32.totalorder %s18, 0
      %p80 = por %p78, %p79
      %s82 = sadd.s32 %s81, 1
      %p85 = scmp.eq.s32.totalorder %s12, 1
      %p86 = scmp.ne.s32.totalorder %s81, %s83
      %p87 = scmp.eq.s32.totalorder %s12, 0
      %p88 = por %p86, %p87
      %p89 = scmp.ne.s32.totalorder %s81, %s83
      %p90 = scmp.eq.s32.totalorder %s17, 1
      %p91 = por %p89, %p90
      %p92 = scmp.ne.s32.totalorder %s83, %s84
      %p93 = scmp.eq.s32.totalorder %s17, 0
      %p94 = por %p92, %p93
      %p95 = scmp.ne.s32.totalorder %s83, %s84
      %p96 = scmp.eq.s32.totalorder %s18, 1
      %p97 = por %p95, %p96
      %p99 = scmp.ne.s32.totalorder %s84, %s98
      %p100 = scmp.eq.s32.totalorder %s18, 0
      %p101 = por %p99, %p100
      %s103 = sadd.s32 %s102, 1
      %p106 = scmp.eq.s32.totalorder %s12, 1
      %p107 = scmp.ne.s32.totalorder %s102, %s104
      %p108 = scmp.eq.s32.totalorder %s12, 0
      %p109 = por %p107, %p108
      %p110 = scmp.ne.s32.totalorder %s102, %s104
      %p111 = scmp.eq.s32.totalorder %s17, 1
      %p112 = por %p110, %p111
      %p113 = scmp.ne.s32.totalorder %s104, %s105
      %p114 = scmp.eq.s32.totalorder %s17, 0
      %p115 = por %p113, %p114
      %p116 = scmp.ne.s32.totalorder %s104, %s105
      %p117 = scmp.eq.s32.totalorder %s18, 1
      %p118 = por %p116, %p117
      %p120 = scmp.ne.s32.totalorder %s105, %s119
      %p121 = scmp.eq.s32.totalorder %s18, 0
      %p122 = por %p120, %p121
      %s124 = sadd.s32 %s123, 1
      %p127 = scmp.eq.s32.totalorder %s12, 1
      %p128 = scmp.ne.s32.totalorder %s123, %s125
      %p129 = scmp.eq.s32.totalorder %s12, 0
      %p130 = por %p128, %p129
      %p131 = scmp.ne.s32.totalorder %s123, %s125
      %p132 = scmp.eq.s32.totalorder %s17, 1
      %p133 = por %p131, %p132
      %p134 = scmp.ne.s32.totalorder %s125, %s126
      %p135 = scmp.eq.s32.totalorder %s17, 0
      %p136 = por %p134, %p135
      %p137 = scmp.ne.s32.totalorder %s125, %s126
      %p138 = scmp.eq.s32.totalorder %s18, 1
      %p139 = por %p137, %p138
      %p141 = scmp.ne.s32.totalorder %s126, %s140
      %p142 = scmp.eq.s32.totalorder %s18, 0
      %p143 = por %p141, %p142
      %s144 = ssub.s32 %s19, %s31
      %p145 = scmp.eq.s32.totalorder %s144, 0
      %s147 = sadd.s32 %s146, 1
      %s148 = scalar_select %p145, %s146, %s147
      %p151 = pneg %p145
      %p152 = scmp.eq.s32.totalorder %s12, 1
      %p153 = por %p151, %p152
      %p154 = scmp.ne.s32.totalorder %s146, %s149
      %p155 = scmp.eq.s32.totalorder %s12, 0
      %p156 = por %p154, %p155
      %p157 = scmp.ne.s32.totalorder %s146, %s149
      %p158 = scmp.eq.s32.totalorder %s17, 1
      %p159 = por %p157, %p158
      %p160 = scmp.ne.s32.totalorder %s149, %s150
      %p161 = scmp.eq.s32.totalorder %s17, 0
      %p162 = por %p160, %p161
      %p163 = scmp.ne.s32.totalorder %s149, %s150
      %p164 = scmp.eq.s32.totalorder %s18, 1
      %p165 = por %p163, %p164
      %p167 = scmp.ne.s32.totalorder %s150, %s166
      %p168 = scmp.eq.s32.totalorder %s18, 0
      %p169 = por %p167, %p168
      %p170 = scmp.le.s32.totalorder 1, %s12
      %p171 = scmp.lt.s32.totalorder %s12, 3
      %p172 = pnand %p170, %p171
      %p173 = pneg %p172
      // Predicated region
      $region9: #{tpu_custom_call.1} parent=5 // pred_check
        _
      $region10: #{tpu_custom_call.1} parent=5 // pred_check_branch
        %175 = sbr.rel (%p172) target = $region12
      $region11: #{tpu_custom_call.1} parent=5 // pred_region
        %s176 = ssub.s32 %s12, 1
        // Predicated region
        $region13: #{tpu_custom_call.1} parent=11 // pred_check
          %p177 = pneg %p73
        $region14: #{tpu_custom_call.1} parent=11 // pred_check_branch
          %179 = sbr.rel (%p177) target = $region16
        $region15: #{tpu_custom_call.1} parent=11 // pred_region
          _
        $region16: #{tpu_custom_call.1} parent=11 // pred_fallthru
          _
        // Predicated region
        $region17: #{tpu_custom_call.1} parent=11 // pred_check
          %p180 = pneg %p94
        $region18: #{tpu_custom_call.1} parent=11 // pred_check_branch
          %182 = sbr.rel (%p180) target = $region20
        $region19: #{tpu_custom_call.1} parent=11 // pred_region
          %184 = vsyncadd [#allocation6], 0
          %s185 = sshll.u32 %s2, 4
          %s186 = int_to_ptr.hbm [resolvable:$true] %s185
          %s187 = sshll.u32 [#allocation5], 4
          %s188 = int_to_ptr.vmem [resolvable:$true] %s187
          %193 = dma.hbm_to_vmem [thread:$0]  %s186, 512, %s188, [#allocation6], 128, 128, 8
        $region20: #{tpu_custom_call.1} parent=11 // pred_fallthru
          _
        // Predicated region
        $region21: #{tpu_custom_call.1} parent=11 // pred_check
          %p194 = pneg %p115
        $region22: #{tpu_custom_call.1} parent=11 // pred_check_branch
          %196 = sbr.rel (%p194) target = $region24
        $region23: #{tpu_custom_call.1} parent=11 // pred_region
          _
        $region24: #{tpu_custom_call.1} parent=11 // pred_fallthru
          _
        // Predicated region
        $region25: #{tpu_custom_call.1} parent=11 // pred_check
          %p197 = pneg %p136
        $region26: #{tpu_custom_call.1} parent=11 // pred_check_branch
          %199 = sbr.rel (%p197) target = $region28
        $region27: #{tpu_custom_call.1} parent=11 // pred_region
          _
        $region28: #{tpu_custom_call.1} parent=11 // pred_fallthru
          _
      $region12: #{tpu_custom_call.1} parent=5 // pred_fallthru
        _
      %p200 = scmp.lt.s32.totalorder %s12, 2
      // Predicated region
      $region29: #{tpu_custom_call.1} parent=5 // pred_check
        %p201 = pneg %p200
      $region30: #{tpu_custom_call.1} parent=5 // pred_check_branch
        %203 = sbr.rel (%p201) target = $region32
      $region31: #{tpu_custom_call.1} parent=5 // pred_region
        // Predicated region
        $region33: #{tpu_custom_call.1} parent=31 // pred_check
          %p204 = pneg %p46
        $region34: #{tpu_custom_call.1} parent=31 // pred_check_branch
          %206 = sbr.rel (%p204) target = $region36
        $region35: #{tpu_custom_call.1} parent=31 // pred_region
          %s207 = smul.u32 2, %s20
          %p208 = scmp.lt.s32.totalorder %s19, 1
          %s209 = scalar_select %p208, %s19, 1
          %p210 = scmp.lt.s32.totalorder %s207, 1
          %s211 = scalar_select %p210, %s207, 1
          %s212 = smul.addr %s209, 2
          %s213 = sadd.s32 %s211, %s212
          %s214 = smul.addr %s213, 8
          %s215 = scalar_lea.vmem %s0, %s214
          %s216 = smul.u32 2, %s20
        $region36: #{tpu_custom_call.1} parent=31 // pred_fallthru
          _
      $region32: #{tpu_custom_call.1} parent=5 // pred_fallthru
        _
      %p217 = scmp.le.s32.totalorder 1, %s12
      %p218 = scmp.lt.s32.totalorder %s12, 3
      %p219 = pnand %p217, %p218
      %p220 = pneg %p219
      // Predicated region
      $region37: #{tpu_custom_call.1} parent=5 // pred_check
        _
      $region38: #{tpu_custom_call.1} parent=5 // pred_check_branch
        %222 = sbr.rel (%p219) target = $region40
      $region39: #{tpu_custom_call.1} parent=5 // pred_region
        %s223 = ssub.s32 %s12, 1
        // Predicated region
        $region41: #{tpu_custom_call.1} parent=39 // pred_check
          %p224 = pneg %p94
        $region42: #{tpu_custom_call.1} parent=39 // pred_check_branch
          %226 = sbr.rel (%p224) target = $region44
        $region43: #{tpu_custom_call.1} parent=39 // pred_region
          %228 = dma.done [#allocation6], 512
        $region44: #{tpu_custom_call.1} parent=39 // pred_fallthru
          _
        %s229 = smul.u32 2, %s22
        %p230 = scmp.lt.s32.totalorder %s21, 1
        %s231 = scalar_select %p230, %s21, 1
        %p232 = scmp.lt.s32.totalorder %s229, 1
        %s233 = scalar_select %p232, %s229, 1
        %s234 = smul.addr %s231, 2
        %s235 = sadd.s32 %s233, %s234
        %s236 = smul.addr %s235, 8
        %s237 = scalar_lea.vmem %s0, %s236
        %p238 = pneg %p52
        %p239 = pneg %p49
        %p240 = pneg %p73
        %p241 = pneg %p70
        %p242 = pneg %p94
        %p243 = pneg %p91
        %p244 = pneg %p115
        %p245 = pneg %p112
        %p246 = pneg %p136
        %p247 = pneg %p133
        %p248 = pneg %p162
        %p249 = pneg %p159
        %p250 = scmp.lt.s32.totalorder %s21, 1
        %s251 = scalar_select %p250, %s21, 1
        %s252 = smul.addr %s251, 2
        %s253 = smul.addr %s252, 8
        %s254 = scalar_lea.vmem %s5, %s253
        %s255 = smul.u32 2, %s22
        %p256 = scmp.lt.s32.totalorder %s21, 1
        %s257 = scalar_select %p256, %s21, 1
        %p258 = scmp.lt.s32.totalorder %s255, 1
        %s259 = scalar_select %p258, %s255, 1
        %s260 = smul.addr %s257, 2
        %s261 = sadd.s32 %s259, %s260
        %s262 = smul.addr %s261, 8
        %s263 = scalar_lea.vmem %s0, %s262
        %s264 = smul.u32 2, %s22
        %p265 = scmp.lt.s32.totalorder %s21, 1
        %s266 = scalar_select %p265, %s21, 1
        %s267 = smul.addr %s266, 2
        %s268 = smul.addr %s267, 8
        %s269 = scalar_lea.vmem %s5, %s268
        %p270 = scmp.eq.s32.totalorder %s22, 0
        // Predicated region
        $region45: #{tpu_custom_call.1} parent=39 // pred_check
          %p271 = pneg %p270
        $region46: #{tpu_custom_call.1} parent=39 // pred_check_branch
          %273 = sbr.rel (%p271) target = $region48
        $region47: #{tpu_custom_call.1} parent=39 // pred_region
          %vm274 = vcmask 98304
          %275 = vst.msk [vmem:[#allocation2] sm:$0x1] %vm274, -inf
          %276 = vst.msk [vmem:[#allocation3] sm:$0x1] %vm274, 0.0
          %vm277 = vcmask 105472
          %278 = vst.msk [vmem:[#allocation4] sm:$0xff] %vm277, 0.0
          %279 = vst.msk [vmem:[#allocation4 + $0x8] sm:$0xff] %vm277, 0.0
          %280 = vst.msk [vmem:[#allocation4 + $0x10] sm:$0xff] %vm277, 0.0
          %281 = vst.msk [vmem:[#allocation4 + $0x18] sm:$0xff] %vm277, 0.0
          %282 = vst.msk [vmem:[#allocation4 + $0x20] sm:$0xff] %vm277, 0.0
          %283 = vst.msk [vmem:[#allocation4 + $0x28] sm:$0xff] %vm277, 0.0
          %284 = vst.msk [vmem:[#allocation4 + $0x30] sm:$0xff] %vm277, 0.0
          %285 = vst.msk [vmem:[#allocation4 + $0x38] sm:$0xff] %vm277, 0.0
          %286 = vst.msk [vmem:[#allocation4 + $0x40] sm:$0xff] %vm277, 0.0
          %287 = vst.msk [vmem:[#allocation4 + $0x48] sm:$0xff] %vm277, 0.0
          %288 = vst.msk [vmem:[#allocation4 + $0x50] sm:$0xff] %vm277, 0.0
          %289 = vst.msk [vmem:[#allocation4 + $0x58] sm:$0xff] %vm277, 0.0
          %290 = vst.msk [vmem:[#allocation4 + $0x60] sm:$0xff] %vm277, 0.0
          %291 = vst.msk [vmem:[#allocation4 + $0x68] sm:$0xff] %vm277, 0.0
          %292 = vst.msk [vmem:[#allocation4 + $0x70] sm:$0xff] %vm277, 0.0
          %293 = vst.msk [vmem:[#allocation4 + $0x78] sm:$0xff] %vm277, 0.0
        $region48: #{tpu_custom_call.1} parent=39 // pred_fallthru
          _
        %v294 = vld [vmem:[%s263] sm:$0xff]
        %v295 = vld [vmem:[%s263 + $0x8] sm:$0xff]
        %v296 = vld [vmem:[%s1] sm:$0xff]
        %v297 = vld [vmem:[%s1 + $0x8] sm:$0xff]
        %v298 = vld [vmem:[%s1 + $0x10] sm:$0xff]
        %v299 = vld [vmem:[%s1 + $0x18] sm:$0xff]
        %v300 = vld [vmem:[%s3] sm:$0x1]
        %v302 = vperm.slane %v300, 0
        %vm304 = vcmask 261120
        %v306 = vsel %vm304, %v294, 0
        %v309 = vsel %vm304, %v295, 0
        %311 = vmatpush.msra.mxu0 0.0
        %312 = vmatpush.msra.mxu0 0.0
        %313 = vmatpush.msra.mxu0 0.0
        %314 = vmatpush.msra.mxu0 0.0
        %315 = vmatpush.msra.mxu0 0.0
        %316 = vmatpush.msra.mxu0 0.0
        %317 = vmatpush.msra.mxu0 0.0
        %318 = vmatpush.msra.mxu0 0.0
        %319 = vmatpush.msra.mxu0 0.0
        %320 = vmatpush.msra.mxu0 0.0
        %321 = vmatpush.msra.mxu0 0.0
        %322 = vmatpush.msra.mxu0 0.0
        %323 = vmatpush.msra.mxu0 %v299
        %324 = vmatpush.msra.mxu0 %v298
        %325 = vmatpush.msra.mxu0 %v297
        %326 = vmatpush.msra.mxu0 %v296
        %327 = vmatmul.f32.gmra.mxu0 %v306
        %v328 = vpop.f32.mrf.mxu0
        %v329 = vadd.f32 %v302, %v328
        %330 = vmatmul.f32.gmra.mxu0 %v309
        %v331 = vpop.f32.mrf.mxu0
        %v332 = vadd.f32 %v302, %v331
        %333 = vdwg.mxu0
        %v334 = vld [vmem:[#allocation5] sm:$0xff]
        %v335 = vld [vmem:[#allocation5 + $0x8] sm:$0xff]
        %v336 = vld [vmem:[#allocation5 + $0x10] sm:$0xff]
        %v337 = vld [vmem:[#allocation5 + $0x18] sm:$0xff]
        %v338 = vld [vmem:[%s4] sm:$0x1]
        %v340 = vperm.slane %v338, 0
        %342 = vmatpush.msra.mxu0 0.0
        %343 = vmatpush.msra.mxu0 0.0
        %344 = vmatpush.msra.mxu0 0.0
        %345 = vmatpush.msra.mxu0 0.0
        %346 = vmatpush.msra.mxu0 0.0
        %347 = vmatpush.msra.mxu0 0.0
        %348 = vmatpush.msra.mxu0 0.0
        %349 = vmatpush.msra.mxu0 0.0
        %350 = vmatpush.msra.mxu0 0.0
        %351 = vmatpush.msra.mxu0 0.0
        %352 = vmatpush.msra.mxu0 0.0
        %353 = vmatpush.msra.mxu0 0.0
        %354 = vmatpush.msra.mxu0 %v337
        %355 = vmatpush.msra.mxu0 %v336
        %356 = vmatpush.msra.mxu0 %v335
        %357 = vmatpush.msra.mxu0 %v334
        %358 = vmatmul.f32.gmra.mxu0 %v306
        %v359 = vpop.f32.mrf.mxu0
        %v360 = vadd.f32 %v340, %v359
        %361 = vmatmul.f32.gmra.mxu0 %v309
        %v362 = vpop.f32.mrf.mxu0
        %v363 = vadd.f32 %v340, %v362
        %364 = vdwg.mxu0
        %v365 = vld [vmem:[#allocation2] sm:$0x1]
        %vm366 = vcmask 105472
        %v367 = vsel %vm366, %v329, -inf
        %v368 = vsel %vm366, %v332, -inf
        %v369 = vmax.f32 %v367, %v368
        %v370 = vrot.slane %v369, 4
        %v371 = vmax.f32 %v369, %v370
        %v372 = vrot.slane %v371, 2
        %v373 = vmax.f32 %v371, %v372
        %v374 = vrot.slane %v373, 1
        %v375 = vmax.f32 %v373, %v374
        %v376 = vmax.f32 %v365, %v375
        %v377 = vsub.f32 %v365, %v376
        %v378 = vmul.f32 %v377, 1.442695
        %v379 = vpow.pop %v378
        %v381 = vperm.slane %v376, 0
        %v383 = vsub.f32 %v329, %v381
        %v384 = vsub.f32 %v332, %v381
        %v385 = vmul.f32 %v383, 1.442695
        %v386 = vpow.pop %v385
        %v387 = vmul.f32 %v384, 1.442695
        %v388 = vpow.pop %v387
        %v389 = vld [vmem:[#allocation3] sm:$0x1]
        %v390 = vmul.f32 %v379, %v389
        %v391 = vsel %vm366, %v386, 0.0
        %v392 = vsel %vm366, %v388, 0.0
        %v393 = vadd.f32 %v391, %v392
        %v394 = vrot.slane %v393, 4
        %v395 = vadd.f32 %v393, %v394
        %v396 = vrot.slane %v395, 2
        %v397 = vadd.f32 %v395, %v396
        %v398 = vrot.slane %v397, 1
        %v399 = vadd.f32 %v397, %v398
        %v400 = vadd.f32 %v390, %v399
        %vm401 = vcmask 98304
        %402 = vst.msk [vmem:[#allocation3] sm:$0x1] %vm401, %v400
        %403 = vst.msk [vmem:[#allocation2] sm:$0x1] %vm401, %v376
        %404 = vxpose.xlu0.b32.start [1/16] %v360, 128
        %405 = vxpose.xlu0.b32.cont [2/16] %v363, 128
        %406 = vxpose.xlu0.b32.cont [3/16] 0.0, 128
        %407 = vxpose.xlu0.b32.cont [4/16] 0.0, 128
        %408 = vxpose.xlu0.b32.cont [5/16] 0.0, 128
        %409 = vxpose.xlu0.b32.cont [6/16] 0.0, 128
        %410 = vxpose.xlu0.b32.cont [7/16] 0.0, 128
        %411 = vxpose.xlu0.b32.cont [8/16] 0.0, 128
        %412 = vxpose.xlu0.b32.cont [9/16] 0.0, 128
        %413 = vxpose.xlu0.b32.cont [10/16] 0.0, 128
        %414 = vxpose.xlu0.b32.cont [11/16] 0.0, 128
        %415 = vxpose.xlu0.b32.cont [12/16] 0.0, 128
        %416 = vxpose.xlu0.b32.cont [13/16] 0.0, 128
        %417 = vxpose.xlu0.b32.cont [14/16] 0.0, 128
        %418 = vxpose.xlu0.b32.cont [15/16] 0.0, 128
        %419 = vxpose.xlu0.b32.end [16/16] 0.0, 128
        %v420 = vpop.trf.xlu0
        %v421 = vpop.trf.xlu0
        %v422 = vpop.trf.xlu0
        %v423 = vpop.trf.xlu0
        %v424 = vpop.trf.xlu0
        %v425 = vpop.trf.xlu0
        %v426 = vpop.trf.xlu0
        %v427 = vpop.trf.xlu0
        %v428 = vpop.trf.xlu0
        %v429 = vpop.trf.xlu0
        %v430 = vpop.trf.xlu0
        %v431 = vpop.trf.xlu0
        %v432 = vpop.trf.xlu0
        %v433 = vpop.trf.xlu0
        %v434 = vpop.trf.xlu0
        %v435 = vpop.trf.xlu0
        %vm436 = vcmask 130048
        %v438 = vsel %vm436, %v420, 0
        %v441 = vsel %vm436, %v421, 0
        %v444 = vsel %vm436, %v422, 0
        %v447 = vsel %vm436, %v423, 0
        %v450 = vsel %vm436, %v424, 0
        %v453 = vsel %vm436, %v425, 0
        %v456 = vsel %vm436, %v426, 0
        %v459 = vsel %vm436, %v427, 0
        %v462 = vsel %vm436, %v428, 0
        %v465 = vsel %vm436, %v429, 0
        %v468 = vsel %vm436, %v430, 0
        %v471 = vsel %vm436, %v431, 0
        %v474 = vsel %vm436, %v432, 0
        %v477 = vsel %vm436, %v433, 0
        %v480 = vsel %vm436, %v434, 0
        %v483 = vsel %vm436, %v435, 0
        %485 = vmatpush.msra.mxu0 0.0
        %486 = vmatpush.msra.mxu0 0.0
        %487 = vmatpush.msra.mxu0 0.0
        %488 = vmatpush.msra.mxu0 0.0
        %489 = vmatpush.msra.mxu0 0.0
        %490 = vmatpush.msra.mxu0 0.0
        %491 = vmatpush.msra.mxu0 0.0
        %492 = vmatpush.msra.mxu0 0.0
        %493 = vmatpush.msra.mxu0 0.0
        %494 = vmatpush.msra.mxu0 0.0
        %495 = vmatpush.msra.mxu0 0.0
        %496 = vmatpush.msra.mxu0 0.0
        %497 = vmatpush.msra.mxu0 0.0
        %498 = vmatpush.msra.mxu0 0.0
        %499 = vmatpush.msra.mxu0 %v388
        %500 = vmatpush.msra.mxu0 %v386
        %501 = vmatmul.f32.gmra.mxu0 %v438
        %v502 = vpop.f32.mrf.mxu0
        %v503 = vadd.f32 0.0, %v502
        %504 = vmatmul.f32.gmra.mxu0 %v441
        %v505 = vpop.f32.mrf.mxu0
        %v506 = vadd.f32 0.0, %v505
        %507 = vmatmul.f32.gmra.mxu0 %v444
        %v508 = vpop.f32.mrf.mxu0
        %v509 = vadd.f32 0.0, %v508
        %510 = vmatmul.f32.gmra.mxu0 %v447
        %v511 = vpop.f32.mrf.mxu0
        %v512 = vadd.f32 0.0, %v511
        %513 = vmatmul.f32.gmra.mxu0 %v450
        %v514 = vpop.f32.mrf.mxu0
        %v515 = vadd.f32 0.0, %v514
        %516 = vmatmul.f32.gmra.mxu0 %v453
        %v517 = vpop.f32.mrf.mxu0
        %v518 = vadd.f32 0.0, %v517
        %519 = vmatmul.f32.gmra.mxu0 %v456
        %v520 = vpop.f32.mrf.mxu0
        %v521 = vadd.f32 0.0, %v520
        %522 = vmatmul.f32.gmra.mxu0 %v459
        %v523 = vpop.f32.mrf.mxu0
        %v524 = vadd.f32 0.0, %v523
        %525 = vmatmul.f32.gmra.mxu0 %v462
        %v526 = vpop.f32.mrf.mxu0
        %v527 = vadd.f32 0.0, %v526
        %528 = vmatmul.f32.gmra.mxu0 %v465
        %v529 = vpop.f32.mrf.mxu0
        %v530 = vadd.f32 0.0, %v529
        %531 = vmatmul.f32.gmra.mxu0 %v468
        %v532 = vpop.f32.mrf.mxu0
        %v533 = vadd.f32 0.0, %v532
        %534 = vmatmul.f32.gmra.mxu0 %v471
        %v535 = vpop.f32.mrf.mxu0
        %v536 = vadd.f32 0.0, %v535
        %537 = vmatmul.f32.gmra.mxu0 %v474
        %v538 = vpop.f32.mrf.mxu0
        %v539 = vadd.f32 0.0, %v538
        %540 = vmatmul.f32.gmra.mxu0 %v477
        %v541 = vpop.f32.mrf.mxu0
        %v542 = vadd.f32 0.0, %v541
        %543 = vmatmul.f32.gmra.mxu0 %v480
        %v544 = vpop.f32.mrf.mxu0
        %v545 = vadd.f32 0.0, %v544
        %546 = vmatmul.f32.gmra.mxu0 %v483
        %v547 = vpop.f32.mrf.mxu0
        %v548 = vadd.f32 0.0, %v547
        %549 = vdwg.mxu0
        %v550 = vld [vmem:[#allocation4] sm:$0xff]
        %v551 = vld [vmem:[#allocation4 + $0x8] sm:$0xff]
        %v552 = vld [vmem:[#allocation4 + $0x10] sm:$0xff]
        %v553 = vld [vmem:[#allocation4 + $0x18] sm:$0xff]
        %v554 = vld [vmem:[#allocation4 + $0x20] sm:$0xff]
        %v555 = vld [vmem:[#allocation4 + $0x28] sm:$0xff]
        %v556 = vld [vmem:[#allocation4 + $0x30] sm:$0xff]
        %v557 = vld [vmem:[#allocation4 + $0x38] sm:$0xff]
        %v558 = vld [vmem:[#allocation4 + $0x40] sm:$0xff]
        %v559 = vld [vmem:[#allocation4 + $0x48] sm:$0xff]
        %v560 = vld [vmem:[#allocation4 + $0x50] sm:$0xff]
        %v561 = vld [vmem:[#allocation4 + $0x58] sm:$0xff]
        %v562 = vld [vmem:[#allocation4 + $0x60] sm:$0xff]
        %v563 = vld [vmem:[#allocation4 + $0x68] sm:$0xff]
        %v564 = vld [vmem:[#allocation4 + $0x70] sm:$0xff]
        %v565 = vld [vmem:[#allocation4 + $0x78] sm:$0xff]
        %v567 = vperm.slane %v379, 0
        %v569 = vmul.f32 %v550, %v567
        %v570 = vmul.f32 %v551, %v567
        %v571 = vmul.f32 %v552, %v567
        %v572 = vmul.f32 %v553, %v567
        %v573 = vmul.f32 %v554, %v567
        %v574 = vmul.f32 %v555, %v567
        %v575 = vmul.f32 %v556, %v567
        %v576 = vmul.f32 %v557, %v567
        %v577 = vmul.f32 %v558, %v567
        %v578 = vmul.f32 %v559, %v567
        %v579 = vmul.f32 %v560, %v567
        %v580 = vmul.f32 %v561, %v567
        %v581 = vmul.f32 %v562, %v567
        %v582 = vmul.f32 %v563, %v567
        %v583 = vmul.f32 %v564, %v567
        %v584 = vmul.f32 %v565, %v567
        %v585 = vadd.f32 %v569, %v503
        %v586 = vadd.f32 %v570, %v506
        %v587 = vadd.f32 %v571, %v509
        %v588 = vadd.f32 %v572, %v512
        %v589 = vadd.f32 %v573, %v515
        %v590 = vadd.f32 %v574, %v518
        %v591 = vadd.f32 %v575, %v521
        %v592 = vadd.f32 %v576, %v524
        %v593 = vadd.f32 %v577, %v527
        %v594 = vadd.f32 %v578, %v530
        %v595 = vadd.f32 %v579, %v533
        %v596 = vadd.f32 %v580, %v536
        %v597 = vadd.f32 %v581, %v539
        %v598 = vadd.f32 %v582, %v542
        %v599 = vadd.f32 %v583, %v545
        %v600 = vadd.f32 %v584, %v548
        %601 = vst.msk [vmem:[#allocation4] sm:$0xff] %vm366, %v585
        %602 = vst.msk [vmem:[#allocation4 + $0x8] sm:$0xff] %vm366, %v586
        %603 = vst.msk [vmem:[#allocation4 + $0x10] sm:$0xff] %vm366, %v587
        %604 = vst.msk [vmem:[#allocation4 + $0x18] sm:$0xff] %vm366, %v588
        %605 = vst.msk [vmem:[#allocation4 + $0x20] sm:$0xff] %vm366, %v589
        %606 = vst.msk [vmem:[#allocation4 + $0x28] sm:$0xff] %vm366, %v590
        %607 = vst.msk [vmem:[#allocation4 + $0x30] sm:$0xff] %vm366, %v591
        %608 = vst.msk [vmem:[#allocation4 + $0x38] sm:$0xff] %vm366, %v592
        %609 = vst.msk [vmem:[#allocation4 + $0x40] sm:$0xff] %vm366, %v593
        %610 = vst.msk [vmem:[#allocation4 + $0x48] sm:$0xff] %vm366, %v594
        %611 = vst.msk [vmem:[#allocation4 + $0x50] sm:$0xff] %vm366, %v595
        %612 = vst.msk [vmem:[#allocation4 + $0x58] sm:$0xff] %vm366, %v596
        %613 = vst.msk [vmem:[#allocation4 + $0x60] sm:$0xff] %vm366, %v597
        %614 = vst.msk [vmem:[#allocation4 + $0x68] sm:$0xff] %vm366, %v598
        %615 = vst.msk [vmem:[#allocation4 + $0x70] sm:$0xff] %vm366, %v599
        %616 = vst.msk [vmem:[#allocation4 + $0x78] sm:$0xff] %vm366, %v600
        // Predicated region
        $region49: #{tpu_custom_call.1} parent=39 // pred_check
          %p617 = pneg %p270
        $region50: #{tpu_custom_call.1} parent=39 // pred_check_branch
          %619 = sbr.rel (%p617) target = $region52
        $region51: #{tpu_custom_call.1} parent=39 // pred_region
          %v620 = vld [vmem:[#allocation3] sm:$0x1]
          %v621 = vrcp.pop %v620
          %v622 = vmul.f32 %v620, %v621
          %v623 = vsub.f32 1.0, %v622
          %v624 = vmul.f32 %v621, %v623
          %v625 = vadd.f32 %v621, %v624
          %vm626 = vweird.f32 %v620
          %vm627 = vweird.f32 %v621
          %vm628 = vmor %vm626, %vm627
          %v629 = vsel %vm628, %v621, %v625
          %v630 = vand.u32 2147483647, %v620
          %vm631 = vcmp.eq.f32.partialorder %v630, 8.507059e+37
          %v632 = vand.u32 %v620, 2147483648
          %v633 = vor.u32 1.1754944e-38, %v632
          %v634 = vsel %vm631, %v633, %v629
          %v635 = vld [vmem:[#allocation4] sm:$0xff]
          %v636 = vld [vmem:[#allocation4 + $0x8] sm:$0xff]
          %v637 = vld [vmem:[#allocation4 + $0x10] sm:$0xff]
          %v638 = vld [vmem:[#allocation4 + $0x18] sm:$0xff]
          %v639 = vld [vmem:[#allocation4 + $0x20] sm:$0xff]
          %v640 = vld [vmem:[#allocation4 + $0x28] sm:$0xff]
          %v641 = vld [vmem:[#allocation4 + $0x30] sm:$0xff]
          %v642 = vld [vmem:[#allocation4 + $0x38] sm:$0xff]
          %v643 = vld [vmem:[#allocation4 + $0x40] sm:$0xff]
          %v644 = vld [vmem:[#allocation4 + $0x48] sm:$0xff]
          %v645 = vld [vmem:[#allocation4 + $0x50] sm:$0xff]
          %v646 = vld [vmem:[#allocation4 + $0x58] sm:$0xff]
          %v647 = vld [vmem:[#allocation4 + $0x60] sm:$0xff]
          %v648 = vld [vmem:[#allocation4 + $0x68] sm:$0xff]
          %v649 = vld [vmem:[#allocation4 + $0x70] sm:$0xff]
          %v650 = vld [vmem:[#allocation4 + $0x78] sm:$0xff]
          %v652 = vperm.slane %v634, 0
          %v654 = vmul.f32 %v635, %v652
          %v655 = vmul.f32 %v636, %v652
          %v656 = vmul.f32 %v637, %v652
          %v657 = vmul.f32 %v638, %v652
          %v658 = vmul.f32 %v639, %v652
          %v659 = vmul.f32 %v640, %v652
          %v660 = vmul.f32 %v641, %v652
          %v661 = vmul.f32 %v642, %v652
          %v662 = vmul.f32 %v643, %v652
          %v663 = vmul.f32 %v644, %v652
          %v664 = vmul.f32 %v645, %v652
          %v665 = vmul.f32 %v646, %v652
          %v666 = vmul.f32 %v647, %v652
          %v667 = vmul.f32 %v648, %v652
          %v668 = vmul.f32 %v649, %v652
          %v669 = vmul.f32 %v650, %v652
          %670 = vxpose.xlu0.b32.start [1/16] %v654, 128
          %671 = vxpose.xlu0.b32.cont [2/16] %v655, 128
          %672 = vxpose.xlu0.b32.cont [3/16] %v656, 128
          %673 = vxpose.xlu0.b32.cont [4/16] %v657, 128
          %674 = vxpose.xlu0.b32.cont [5/16] %v658, 128
          %675 = vxpose.xlu0.b32.cont [6/16] %v659, 128
          %676 = vxpose.xlu0.b32.cont [7/16] %v660, 128
          %677 = vxpose.xlu0.b32.cont [8/16] %v661, 128
          %678 = vxpose.xlu0.b32.cont [9/16] %v662, 128
          %679 = vxpose.xlu0.b32.cont [10/16] %v663, 128
          %680 = vxpose.xlu0.b32.cont [11/16] %v664, 128
          %681 = vxpose.xlu0.b32.cont [12/16] %v665, 128
          %682 = vxpose.xlu0.b32.cont [13/16] %v666, 128
          %683 = vxpose.xlu0.b32.cont [14/16] %v667, 128
          %684 = vxpose.xlu0.b32.cont [15/16] %v668, 128
          %685 = vxpose.xlu0.b32.end [16/16] %v669, 128
          %v686 = vpop.trf.xlu0
          %v687 = vpop.trf.xlu0
          %v688 = vpop.trf.xlu0
          %v689 = vpop.trf.xlu0
          %v690 = vpop.trf.xlu0
          %v691 = vpop.trf.xlu0
          %v692 = vpop.trf.xlu0
          %v693 = vpop.trf.xlu0
          %v694 = vpop.trf.xlu0
          %v695 = vpop.trf.xlu0
          %v696 = vpop.trf.xlu0
          %v697 = vpop.trf.xlu0
          %v698 = vpop.trf.xlu0
          %v699 = vpop.trf.xlu0
          %v700 = vpop.trf.xlu0
          %v701 = vpop.trf.xlu0
          %702 = vst [vmem:[%s269] sm:$0xff] %v686
          %703 = vst [vmem:[%s269 + $0x8] sm:$0x1f] %v687
        $region52: #{tpu_custom_call.1} parent=39 // pred_fallthru
          _
        %p704 = scmp.lt.s32.totalorder %s21, 1
        %s705 = scalar_select %p704, %s21, 1
        %s706 = smul.addr %s705, 2
        %s707 = smul.addr %s706, 8
        %s708 = scalar_lea.vmem %s5, %s707
        // Predicated region
        $region53: #{tpu_custom_call.1} parent=39 // pred_check
          %p709 = pneg %p159
        $region54: #{tpu_custom_call.1} parent=39 // pred_check_branch
          %711 = sbr.rel (%p709) target = $region56
        $region55: #{tpu_custom_call.1} parent=39 // pred_region
          _
        $region56: #{tpu_custom_call.1} parent=39 // pred_fallthru
          _
      $region40: #{tpu_custom_call.1} parent=5 // pred_fallthru
        _
      %p712 = scmp.le.s32.totalorder 2, %s12
      // Predicated region
      $region57: #{tpu_custom_call.1} parent=5 // pred_check
        %p713 = pneg %p712
      $region58: #{tpu_custom_call.1} parent=5 // pred_check_branch
        %715 = sbr.rel (%p713) target = $region60
      $region59: #{tpu_custom_call.1} parent=5 // pred_region
        %s716 = ssub.s32 %s12, 2
        // Predicated region
        $region61: #{tpu_custom_call.1} parent=59 // pred_check
          %p717 = pneg %p165
        $region62: #{tpu_custom_call.1} parent=59 // pred_check_branch
          %719 = sbr.rel (%p717) target = $region64
        $region63: #{tpu_custom_call.1} parent=59 // pred_region
          %p720 = scmp.lt.s32.totalorder %s23, 1
          %s721 = scalar_select %p720, %s23, 1
          %s722 = smul.addr %s721, 2
          %s723 = smul.addr %s722, 8
          %s724 = scalar_lea.vmem %s5, %s723
        $region64: #{tpu_custom_call.1} parent=59 // pred_fallthru
          _
      $region60: #{tpu_custom_call.1} parent=5 // pred_fallthru
        _
    $region6: #{tpu_custom_call.1} parent=1 // loop_footer
      %s16 = sadd.s32 1, %s12
    $region7: #{tpu_custom_call.1} parent=1 // loop_footer_branch
      %11 = sbr.rel target = $region3
    $region8: #{tpu_custom_call.1} parent=1 // loop_exit
      _
    %725 = vsyncpa [#allocation6], 1
    %s726 = scalar_lea.sflag [#allocation6], 1
    %727 = vsyncpa %s726, 1

</llo_original>
